<compile_context>
chip_gen: v7x
topology: tpu7x:2x2x1
jax: 0.10.0
libtpu: 0.0.40
codegen_flags: <defaults>
</compile_context>

<pallas_src>
import jax
import jax.numpy as jnp
from jax.experimental import pallas as pl
from jax.experimental.pallas import tpu as pltpu

_LANE = 128


def _normalize_kernel(x_ref, o_ref):
    # Block: (TN, C, TR, 128). Channel axis is a leading vreg "batch" axis, so
    # the reduction over axis=1 is elementwise VPU adds and the broadcast of
    # the reciprocal over channels is free.
    x = x_ref[...].astype(jnp.float32)               # f32 accumulation (safe for bf16 in)
    n = jnp.sum(x, axis=1, keepdims=True)            # (TN, 1, TR, 128)
    inv = pl.reciprocal(n, approx=False)             # exact: 1e-6 tolerance must hold
    o_ref[...] = (x * inv).astype(o_ref.dtype)       # C multiplies instead of C divides


def _vmem_capacity_bytes(default_bytes: int = 64 * 1024 * 1024) -> int:
    """Physical VMEM per core; conservative 64 MiB (v7x) fallback."""
    try:
        cap = int(pltpu.get_tpu_info().vmem_capacity_bytes)
        if cap > 0:
            return cap
    except Exception:
        pass
    return default_bytes


def normalize(x: jax.Array, *, target_block_bytes: int | None = None) -> jax.Array:
    """x: (N, C, H, W) float array. Returns x / x.sum(axis=1, keepdims=True)."""
    N, C, H, W = x.shape
    S = H * W
    itemsize = jnp.dtype(x.dtype).itemsize

    capacity = _vmem_capacity_bytes()
    if target_block_bytes is None:
        # ~4 MiB blocks on 64-MiB-VMEM parts (v7x), ~6 MiB on 128-MiB parts.
        target_block_bytes = (4 << 20) if capacity <= (64 << 20) else (6 << 20)

    # Spatial axis as rows of 128 lanes; tile the row axis (no rounding of R --
    # Pallas masks the ragged last block).
    R = pl.cdiv(S, _LANE)
    per_row_bytes = C * _LANE * itemsize
    tr_target = max(1, target_block_bytes // per_row_bytes)
    if R <= tr_target:
        tr = R                                    # full spatial dim -> no 8-row rule
    else:
        tr = max(8, (tr_target // 8) * 8)         # sublane-aligned tile rows
    r_tiles = pl.cdiv(R, tr)
    # TODO(synk): very large C (>~2048 f32 on 64-MiB VMEM) would need a third
    # "arbitrary" C-chunk grid axis with an f32 accumulator scratch.

    # Fold batch items into the block when a single spatial tile is small.
    per_batch_block_bytes = C * tr * _LANE * itemsize
    tn = 1
    if r_tiles == 1 and per_batch_block_bytes < target_block_bytes:
        tn = max(1, min(N, target_block_bytes // per_batch_block_bytes))
        if N >= 2:
            tn = min(tn, pl.cdiv(N, 2))           # keep >=2 grid steps for megacore
    n_tiles = pl.cdiv(N, tn)

    # Pad only when the spatial extent is not lane-aligned (pad value 1.0 keeps
    # the channel sum of padded columns at C, never 0/0); aligned case is a
    # pure reshape with zero extra HBM traffic.
    P = R * _LANE
    x3 = x.reshape(N, C, S)
    if P != S:
        x3 = jnp.pad(x3, ((0, 0), (0, 0), (0, P - S)), constant_values=1.0)
    x4 = x3.reshape(N, C, R, _LANE)

    # VMEM budget: in + out double-buffered (4x block) plus the in-kernel f32
    # temporary (2x f32 block; only larger than block for sub-f32 inputs),
    # plus headroom -- capped below physical VMEM.
    block_bytes = tn * C * tr * _LANE * itemsize
    f32_block_bytes = tn * C * tr * _LANE * 4
    vmem_limit = 4 * block_bytes + 2 * f32_block_bytes + (2 << 20)
    vmem_limit = int(min(max(vmem_limit, 8 << 20), capacity - (16 << 20)))

    out = pl.pallas_call(
        _normalize_kernel,
        out_shape=jax.ShapeDtypeStruct((N, C, R, _LANE), x.dtype),
        grid=(n_tiles, r_tiles),
        in_specs=[pl.BlockSpec((tn, C, tr, _LANE), lambda i, j: (i, 0, j, 0))],
        out_specs=pl.BlockSpec((tn, C, tr, _LANE), lambda i, j: (i, 0, j, 0)),
        compiler_params=pltpu.CompilerParams(
            dimension_semantics=("parallel", "parallel"),
            vmem_limit_bytes=vmem_limit,
        ),
        cost_estimate=pl.CostEstimate(
            flops=3 * N * C * P,          # sum + reciprocal-ish + mul
            transcendentals=0,            # exact reciprocal, not EUP
            bytes_accessed=2 * N * C * P * itemsize,
        ),
    )(x4)

    if P != S:
        out = out.reshape(N, C, P)[:, :, :S]
    return out.reshape(N, C, H, W)


def normalize_ref(x: jax.Array) -> jax.Array:
    # Pure-JAX reference mirroring the PyTorch forward.
    n = jnp.sum(x, axis=1)[:, None, :, :]
    return x / n


if __name__ == "__main__":
    key = jax.random.PRNGKey(0)
    # Small NCHW input consistent with the module's forward (strictly positive
    # so the channel sum is never zero).
    x = jax.random.uniform(key, (2, 4, 16, 16), dtype=jnp.float32) + 0.5

    out = normalize(x)
    out = jax.block_until_ready(out)

    ref = normalize_ref(x)
    assert out.shape == ref.shape, (out.shape, ref.shape)
    assert out.dtype == ref.dtype, (out.dtype, ref.dtype)
    assert jnp.allclose(out, ref, atol=1e-6, rtol=1e-6), "mismatch vs reference"

    print("KERNEL_OK")
</pallas_src>

<mosaic_0001>
module attributes {stable_mosaic.version = 11 : i64} {
  func.func @_normalize_kernel(%arg0: i32, %arg1: i32, %arg2: memref<1x4x2x128xf32, #tpu.memory_space<vmem>>, %arg3: memref<1x4x2x128xf32, #tpu.memory_space<vmem>>) attributes {dimension_semantics = [#tpu.dimension_semantics<parallel>, #tpu.dimension_semantics<parallel>], iteration_bounds = array<i64: 2, 1>, scalar_prefetch = 0 : i64, scratch_operands = 0 : i64, tpu.core_type = #tpu.core_type<tc>, window_params = [{transform_indices = @transform_0, window_bounds = array<i64: 1, 4, 2, 128>}, {transform_indices = @transform_1, window_bounds = array<i64: 1, 4, 2, 128>}]} {
    %c0 = arith.constant 0 : index
    %c0_0 = arith.constant 0 : index
    %c0_1 = arith.constant 0 : index
    %c0_2 = arith.constant 0 : index
    %0 = vector.load %arg2[%c0, %c0_0, %c0_1, %c0_2] : memref<1x4x2x128xf32, #tpu.memory_space<vmem>>, vector<1x4x2x128xf32>
    %cst = arith.constant dense<0.000000e+00> : vector<1x2x128xf32>
    %1 = vector.multi_reduction <add>, %0, %cst [1] : vector<1x4x2x128xf32> to vector<1x2x128xf32>
    %2 = vector.shape_cast %1 : vector<1x2x128xf32> to vector<1x1x2x128xf32>
    %3 = tpu.reciprocal %2 : vector<1x1x2x128xf32> -> vector<1x1x2x128xf32>
    %4 = vector.broadcast %3 : vector<1x1x2x128xf32> to vector<1x4x2x128xf32>
    %5 = arith.mulf %0, %4 : vector<1x4x2x128xf32>
    %c0_3 = arith.constant 0 : index
    %c0_4 = arith.constant 0 : index
    %c0_5 = arith.constant 0 : index
    %c0_6 = arith.constant 0 : index
    %6 = vector.load %arg3[%c0_3, %c0_4, %c0_5, %c0_6] : memref<1x4x2x128xf32, #tpu.memory_space<vmem>>, vector<1x4x2x128xf32>
    tpu.vector_store %arg3[%c0_3, %c0_4, %c0_5, %c0_6], %5 {strides = array<i32>} : memref<1x4x2x128xf32, #tpu.memory_space<vmem>>, vector<1x4x2x128xf32>,
    return
  }
  func.func @transform_0(%arg0: i32, %arg1: i32) -> (i32, i32, i32, i32) {
    %c0_i32 = arith.constant 0 : i32
    %c0_i32_0 = arith.constant 0 : i32
    %c0_i32_1 = arith.constant 0 : i32
    return %arg0, %c0_i32, %arg1, %c0_i32_0 : i32, i32, i32, i32
  }
  func.func @transform_1(%arg0: i32, %arg1: i32) -> (i32, i32, i32, i32) {
    %c0_i32 = arith.constant 0 : i32
    %c0_i32_0 = arith.constant 0 : i32
    %c0_i32_1 = arith.constant 0 : i32
    return %arg0, %c0_i32, %arg1, %c0_i32_0 : i32, i32, i32, i32
  }
}

</mosaic_0001>

<llo_original>
// kernel: tpu_custom_call.1
$region0: #{tpu_custom_call.1}
  #allocation0 [shape = 'u32[]', space=smem, size = 0x4, offset = 0x4, fixed_abs, tag = 'smem constant byte address 0x4 - core index']
  #allocation1 [shape = 'u32[144,128]{1,0:T(1,128)}', space=vmem, size = 0x12000, scoped, tag = 'internal scratch']
  %s0 = inlined_call_operand.hbm [shape: f32[2,4,2,128], index: 0, kind: input, shape index: {}]
  %s1 = inlined_call_operand.hbm [shape: f32[2,4,2,128], index: 1, kind: output, shape index: {}]
  %s2 = sld [smem:[#allocation0]]
  $region41: #{tpu_custom_call.1} parent=0
    _
  %s4 = ssub.s32 1, %s2
  %s5 = scalar_select 0, %s4, %s2
  $region1: #{tpu_custom_call.1} parent=0
    #allocation2 [shape = 'u8[8192]{0}', space=vmem, size = 0x2000, scoped, tag = 'input window, operand 0']
    #allocation3 [shape = 's32[2]{0}', space=sflag, size = 0x8, scoped, tag = 'scoped memory for tpu_custom_call.1']
    #allocation4 [shape = 's32[2]{0}', space=sflag, size = 0x8, scoped, tag = 'scoped memory for tpu_custom_call.1']
    #allocation5 [shape = 'u8[8192]{0}', space=vmem, size = 0x2000, scoped, tag = 'output window, operand 0']
    %6 = vsyncpa [#allocation3], 0
    %s7 = scalar_lea.sflag [#allocation3], 1
    %8 = vsyncpa %s7, 0
    %9 = vsyncpa [#allocation4], 0
    %s10 = scalar_lea.sflag [#allocation4], 1
    %11 = vsyncpa %s10, 0
    loop: start=0, step=1, limit=4
    $region2: #{tpu_custom_call.1} parent=1 // loop_pre_header
      _
    $region3: #{tpu_custom_call.1} parent=1 // loop_header
      %s13 = sphi 0, %s17
      %p14 = scmp.ge.s32.totalorder %s13, 4
      %s20 = sphi 0, %s32
      %s21 = sphi 0, %s28
      %s22 = sphi 0, %s20
      %s23 = sphi 0, %s21
      %s24 = sphi 0, %s22
      %s25 = sphi 0, %s23
      %s37 = sphi 0, %s39
      %s40 = sphi 0, %s37
      %s41 = sphi 0, %s40
      %s57 = sphi 0, %s41
      %s65 = sphi 0, %s67
      %s68 = sphi 0, %s65
      %s69 = sphi 0, %s68
      %s85 = sphi 0, %s69
    $region4: #{tpu_custom_call.1} parent=1 // loop_header_branch
      %16 = sbr.rel (%p14) target = $region8
    $region5: #{tpu_custom_call.1} parent=1 // loop_body
      %s18 = ssub.s32 %s13, 1
      %s19 = ssub.s32 %s13, 2
      %s26 = sadd.s32 1, %s21
      %p27 = scmp.ge.s32.totalorder %s26, 1
      %s28 = scalar_select %p27, 0, %s26
      %s29 = sadd.s32 1, %s20
      %s30 = scalar_select %p27, %s29, %s20
      %p31 = scmp.ge.s32.totalorder %s30, 2
      %s32 = scalar_select %p31, 0, %s30
      %s33 = ssub.s32 %s20, %s32
      %s34 = ssub.s32 %s21, %s28
      %s35 = sor.u32 %s33, %s34
      %p36 = scmp.eq.s32.totalorder %s35, 0
      %s38 = sadd.s32 %s37, 1
      %s39 = scalar_select %p36, %s37, %s38
      %p42 = pneg %p36
      %p43 = scmp.eq.s32.totalorder %s13, 1
      %p44 = por %p42, %p43
      %p45 = scmp.ne.s32.totalorder %s37, %s40
      %p46 = scmp.eq.s32.totalorder %s13, 0
      %p47 = por %p45, %p46
      %p48 = scmp.ne.s32.totalorder %s37, %s40
      %p49 = scmp.eq.s32.totalorder %s18, 1
      %p50 = por %p48, %p49
      %p51 = scmp.ne.s32.totalorder %s40, %s41
      %p52 = scmp.eq.s32.totalorder %s18, 0
      %p53 = por %p51, %p52
      %p54 = scmp.ne.s32.totalorder %s40, %s41
      %p55 = scmp.eq.s32.totalorder %s19, 1
      %p56 = por %p54, %p55
      %p58 = scmp.ne.s32.totalorder %s41, %s57
      %p59 = scmp.eq.s32.totalorder %s19, 0
      %p60 = por %p58, %p59
      %s61 = ssub.s32 %s20, %s32
      %s62 = ssub.s32 %s21, %s28
      %s63 = sor.u32 %s61, %s62
      %p64 = scmp.eq.s32.totalorder %s63, 0
      %s66 = sadd.s32 %s65, 1
      %s67 = scalar_select %p64, %s65, %s66
      %p70 = pneg %p64
      %p71 = scmp.eq.s32.totalorder %s13, 1
      %p72 = por %p70, %p71
      %p73 = scmp.ne.s32.totalorder %s65, %s68
      %p74 = scmp.eq.s32.totalorder %s13, 0
      %p75 = por %p73, %p74
      %p76 = scmp.ne.s32.totalorder %s65, %s68
      %p77 = scmp.eq.s32.totalorder %s18, 1
      %p78 = por %p76, %p77
      %p79 = scmp.ne.s32.totalorder %s68, %s69
      %p80 = scmp.eq.s32.totalorder %s18, 0
      %p81 = por %p79, %p80
      %p82 = scmp.ne.s32.totalorder %s68, %s69
      %p83 = scmp.eq.s32.totalorder %s19, 1
      %p84 = por %p82, %p83
      %p86 = scmp.ne.s32.totalorder %s69, %s85
      %p87 = scmp.eq.s32.totalorder %s19, 0
      %p88 = por %p86, %p87
      %p89 = scmp.le.s32.totalorder 1, %s13
      %p90 = scmp.lt.s32.totalorder %s13, 3
      %p91 = pnand %p89, %p90
      %p92 = pneg %p91
      // Predicated region
      $region9: #{tpu_custom_call.1} parent=5 // pred_check
        _
      $region10: #{tpu_custom_call.1} parent=5 // pred_check_branch
        %94 = sbr.rel (%p91) target = $region12
      $region11: #{tpu_custom_call.1} parent=5 // pred_region
        %s95 = ssub.s32 %s13, 1
      $region12: #{tpu_custom_call.1} parent=5 // pred_fallthru
        _
      %p96 = scmp.lt.s32.totalorder %s13, 2
      // Predicated region
      $region13: #{tpu_custom_call.1} parent=5 // pred_check
        %p97 = pneg %p96
      $region14: #{tpu_custom_call.1} parent=5 // pred_check_branch
        %99 = sbr.rel (%p97) target = $region16
      $region15: #{tpu_custom_call.1} parent=5 // pred_region
        // Predicated region
        $region17: #{tpu_custom_call.1} parent=15 // pred_check
          %p100 = pneg %p47
        $region18: #{tpu_custom_call.1} parent=15 // pred_check_branch
          %102 = sbr.rel (%p100) target = $region20
        $region19: #{tpu_custom_call.1} parent=15 // pred_region
          %s103 = sand.u32 %s37, 1
          %s104 = scalar_lea.sflag [#allocation3], %s103
          %s105 = sand.u32 %s37, 1
          %s106 = smul.addr %s105, 8
          %s107 = scalar_lea.vmem [#allocation2], %s106
          %s109 = ssub.s32 128, 128
          %110 = vsyncadd %s104, %s109
          %s111 = smul.addr %s20, 4
          %s112 = sadd.s32 %s21, %s111
          %s113 = smul.addr %s112, 32
          %s114 = scalar_lea.hbm %s0, %s113
          %s115 = sshll.u32 %s107, 4
          %s116 = int_to_ptr.vmem [resolvable:$true] %s115
          %121 = dma.hbm_to_vmem [thread:$0]  %s114, 128, %s116, %s104, 32, 32, 2
        $region20: #{tpu_custom_call.1} parent=15 // pred_fallthru
          _
      $region16: #{tpu_custom_call.1} parent=5 // pred_fallthru
        _
      %p122 = scmp.le.s32.totalorder 1, %s13
      %p123 = scmp.lt.s32.totalorder %s13, 3
      %p124 = pnand %p122, %p123
      %p125 = pneg %p124
      // Predicated region
      $region21: #{tpu_custom_call.1} parent=5 // pred_check
        _
      $region22: #{tpu_custom_call.1} parent=5 // pred_check_branch
        %127 = sbr.rel (%p124) target = $region24
      $region23: #{tpu_custom_call.1} parent=5 // pred_region
        %s128 = ssub.s32 %s13, 1
        %s129 = sand.u32 %s40, 1
        %s130 = scalar_lea.sflag [#allocation3], %s129
        %s131 = sand.u32 %s40, 1
        %s132 = smul.addr %s131, 8
        %s133 = scalar_lea.vmem [#allocation2], %s132
        // Predicated region
        $region25: #{tpu_custom_call.1} parent=23 // pred_check
          %p134 = pneg %p53
        $region26: #{tpu_custom_call.1} parent=23 // pred_check_branch
          %136 = sbr.rel (%p134) target = $region28
        $region27: #{tpu_custom_call.1} parent=23 // pred_region
          %137 = dma.done %s130, 128
        $region28: #{tpu_custom_call.1} parent=23 // pred_fallthru
          _
        %s138 = sand.u32 %s40, 1
        %s139 = scalar_lea.sflag [#allocation3], %s138
        %s140 = sand.u32 %s40, 1
        %s141 = smul.addr %s140, 8
        %s142 = scalar_lea.vmem [#allocation2], %s141
        %p143 = pneg %p53
        %p144 = pneg %p50
        %p145 = pneg %p81
        %p146 = pneg %p78
        %s147 = sand.u32 %s68, 1
        %s148 = scalar_lea.sflag [#allocation4], %s147
        %s149 = sand.u32 %s68, 1
        %s150 = smul.addr %s149, 8
        %s151 = scalar_lea.vmem [#allocation5], %s150
        %v152 = vld [vmem:[%s133] sm:$0x3]
        %v153 = vld [vmem:[%s133 + $0x2] sm:$0x3]
        %v154 = vld [vmem:[%s133 + $0x4] sm:$0x3]
        %v155 = vld [vmem:[%s133 + $0x6] sm:$0x3]
        %vm156 = vcmask 1041408
        %v157 = vsel %vm156, %v152, 0.0
        %v158 = vsel %vm156, %v153, 0.0
        %v159 = vadd.f32 %v157, %v158
        %v160 = vsel %vm156, %v154, 0.0
        %v161 = vadd.f32 %v159, %v160
        %v162 = vsel %vm156, %v155, 0.0
        %v163 = vadd.f32 %v161, %v162
        %v164 = vrcp.pop %v163
        %v165 = vmul.f32 %v152, %v164
        %v166 = vmul.f32 %v153, %v164
        %v167 = vmul.f32 %v154, %v164
        %v168 = vmul.f32 %v155, %v164
        %169 = vst [vmem:[%s151] sm:$0x3] %v165
        %170 = vst [vmem:[%s151 + $0x2] sm:$0x3] %v166
        %171 = vst [vmem:[%s151 + $0x4] sm:$0x3] %v167
        %172 = vst [vmem:[%s151 + $0x6] sm:$0x3] %v168
        %s173 = sand.u32 %s68, 1
        %s174 = scalar_lea.sflag [#allocation4], %s173
        %s175 = sand.u32 %s68, 1
        %s176 = smul.addr %s175, 8
        %s177 = scalar_lea.vmem [#allocation5], %s176
        // Predicated region
        $region29: #{tpu_custom_call.1} parent=23 // pred_check
          %p178 = pneg %p78
        $region30: #{tpu_custom_call.1} parent=23 // pred_check_branch
          %180 = sbr.rel (%p178) target = $region32
        $region31: #{tpu_custom_call.1} parent=23 // pred_region
          %s182 = ssub.s32 128, 128
          %183 = vsyncadd %s174, %s182
          %s184 = smul.addr %s22, 4
          %s185 = sadd.s32 %s23, %s184
          %s186 = smul.addr %s185, 32
          %s187 = scalar_lea.hbm %s1, %s186
          %s188 = sshll.u32 %s177, 4
          %s189 = int_to_ptr.vmem [resolvable:$true] %s188
          %194 = dma.vmem_to_hbm [thread:$0]  %s189, 128, %s187, %s174, 32, 32, 2
        $region32: #{tpu_custom_call.1} parent=23 // pred_fallthru
          _
      $region24: #{tpu_custom_call.1} parent=5 // pred_fallthru
        _
      %p195 = scmp.le.s32.totalorder 2, %s13
      // Predicated region
      $region33: #{tpu_custom_call.1} parent=5 // pred_check
        %p196 = pneg %p195
      $region34: #{tpu_custom_call.1} parent=5 // pred_check_branch
        %198 = sbr.rel (%p196) target = $region36
      $region35: #{tpu_custom_call.1} parent=5 // pred_region
        %s199 = ssub.s32 %s13, 2
        // Predicated region
        $region37: #{tpu_custom_call.1} parent=35 // pred_check
          %p200 = pneg %p84
        $region38: #{tpu_custom_call.1} parent=35 // pred_check_branch
          %202 = sbr.rel (%p200) target = $region40
        $region39: #{tpu_custom_call.1} parent=35 // pred_region
          %s203 = sand.u32 %s69, 1
          %s204 = scalar_lea.sflag [#allocation4], %s203
          %s205 = sand.u32 %s69, 1
          %s206 = smul.addr %s205, 8
          %s207 = scalar_lea.vmem [#allocation5], %s206
          %208 = dma.done %s204, 128
        $region40: #{tpu_custom_call.1} parent=35 // pred_fallthru
          _
      $region36: #{tpu_custom_call.1} parent=5 // pred_fallthru
        _
    $region6: #{tpu_custom_call.1} parent=1 // loop_footer
      %s17 = sadd.s32 1, %s13
    $region7: #{tpu_custom_call.1} parent=1 // loop_footer_branch
      %12 = sbr.rel target = $region3
    $region8: #{tpu_custom_call.1} parent=1 // loop_exit
      _
    %209 = vsyncpa [#allocation3], 1
    %s210 = scalar_lea.sflag [#allocation3], 1
    %211 = vsyncpa %s210, 1
    %212 = vsyncpa [#allocation4], 1
    %s213 = scalar_lea.sflag [#allocation4], 1
    %214 = vsyncpa %s213, 1

</llo_original>
